<compile_context>
chip_gen: v7x
topology: tpu7x:2x2x1
jax: 0.10.0
libtpu: 0.0.40
codegen_flags: <defaults>
</compile_context>

<pallas_src>
import jax
import jax.numpy as jnp
from jax.experimental import pallas as pl
from jax.experimental.pallas import tpu as pltpu

_LANES = 512                   # fallback lane-dense last dim (multiple of 128)
_TARGET_TILE_BYTES = 8 << 20   # ~8 MiB tiles: amortizes per-grid-step overhead on all gens


def _scale_kernel(s_ref, x_ref, o_ref):
    # s_ref: (1, 1) f32 scalar in SMEM; x_ref/o_ref: (tm, lanes) tiles in VMEM.
    o_ref[...] = (x_ref[...] * s_ref[0, 0]).astype(o_ref.dtype)


def _vmem_capacity_bytes():
    try:
        return int(pltpu.get_tpu_info().vmem_capacity_bytes)
    except Exception:
        # Be conservative: v7x has the smallest physical VMEM (64 MiB); v5e/v6e have 128 MiB.
        return 64 << 20


def _scale_2d(x2d, s2d, out_dtype, donate_input=False):
    """Run the scalar-multiply kernel over a lane-dense (rows, lanes) slab."""
    rows, lanes = x2d.shape
    itemsize = max(x2d.dtype.itemsize, jnp.dtype(out_dtype).itemsize)

    # Rows per tile: ~8 MiB per tile (based on the wider of in/out dtypes), multiple of 8.
    tm_target = max(8, ((_TARGET_TILE_BYTES // (lanes * itemsize)) // 8) * 8)
    tm = rows if rows <= tm_target else tm_target   # tm == rows => block equals full extent
    grid = (pl.cdiv(rows, tm),)                     # partial last block is masked by Pallas

    # VMEM budget: double-buffered input + output tiles, with headroom, capped to 3/4 of
    # this generation's physical VMEM (v7x: 64 MiB -> 48 MiB cap).
    in_bytes = tm * lanes * x2d.dtype.itemsize
    out_bytes = tm * lanes * jnp.dtype(out_dtype).itemsize
    cap = _vmem_capacity_bytes()
    vmem_limit = int(min(max(2 * (in_bytes + out_bytes) + (8 << 20), 32 << 20),
                         (cap * 3) // 4))

    io_aliases = {}
    if donate_input and jnp.dtype(out_dtype) == x2d.dtype:
        io_aliases = {1: 0}   # reuse the input HBM buffer for the output

    return pl.pallas_call(
        _scale_kernel,
        out_shape=jax.ShapeDtypeStruct((rows, lanes), out_dtype),
        grid_spec=pl.GridSpec(
            grid=grid,
            in_specs=[
                pl.BlockSpec(memory_space=pltpu.SMEM),           # f32 scalar scale
                pl.BlockSpec((tm, lanes), lambda i: (i, 0)),     # lane-dense input tile
            ],
            out_specs=pl.BlockSpec((tm, lanes), lambda i: (i, 0)),
        ),
        compiler_params=pltpu.CompilerParams(
            # TODO(synk): on v7x verify both TensorCores engage; if only one is active in
            # the profile, switch this axis to pltpu.CORE_PARALLEL.
            dimension_semantics=("parallel",),
            vmem_limit_bytes=vmem_limit,
        ),
        input_output_aliases=io_aliases,
    )(s2d, x2d)


def scale_forward(x, scale, donate_input=False):
    """Pallas equivalent of Scale.forward: x * scale. x: any-shape array, scale: shape (1,)."""
    orig_shape = x.shape
    scale = jnp.asarray(scale, dtype=jnp.float32)
    out_dtype = jnp.promote_types(x.dtype, scale.dtype)  # matches torch promotion semantics
    total = x.size
    s2d = scale.reshape(1, 1)

    flat = x.reshape(-1)  # free for a contiguous array

    # Pick a lane width that divides the element count so the 2D reshape is free
    # (no pad copy, no trailing slice copy).
    lanes = None
    for cand in (1024, 512, 256, 128):
        if total % cand == 0:
            lanes = cand
            break

    if lanes is not None:
        x2d = flat.reshape(total // lanes, lanes)
        out2d = _scale_2d(x2d, s2d, out_dtype, donate_input=donate_input)
        return out2d.reshape(orig_shape)

    # Fully unaligned size: kernel on the 512-aligned prefix, tiny XLA multiply on the tail.
    lanes = _LANES
    aligned = (total // lanes) * lanes
    if aligned == 0:
        return (x * scale).astype(out_dtype)  # <512 elements: not worth a kernel launch
    main = flat[:aligned].reshape(aligned // lanes, lanes)
    tail = flat[aligned:]
    out_main = _scale_2d(main, s2d, out_dtype).reshape(-1)
    out_tail = (tail * scale[0]).astype(out_dtype)
    return jnp.concatenate([out_main, out_tail]).reshape(orig_shape)


if __name__ == "__main__":
    key = jax.random.PRNGKey(0)

    # Deterministic parameter init, matching Scale(init_value=0.001)
    scale_param = jnp.array([0.001], dtype=jnp.float32)

    # Primary small shape consistent with the module usage.
    x = jax.random.normal(key, (2, 4, 16, 16), dtype=jnp.float32)
    out = scale_forward(x, scale_param)
    jax.block_until_ready(out)
    ref = x * scale_param[0]
    assert out.shape == ref.shape
    assert out.dtype == ref.dtype
    assert jnp.allclose(out, ref, atol=1e-6), "mismatch vs reference (small shape)"

    # Odd shape: exercises the ragged (prefix + XLA tail) path (total not multiple of 128).
    k2 = jax.random.PRNGKey(1)
    x2 = jax.random.normal(k2, (3, 5, 17, 19), dtype=jnp.float32)
    out2 = scale_forward(x2, scale_param)
    jax.block_until_ready(out2)
    assert jnp.allclose(out2, x2 * scale_param[0], atol=1e-6), "mismatch vs reference (odd shape)"

    # Larger shape: exercises the lane-dense multi-row path.
    k3 = jax.random.PRNGKey(2)
    x3 = jax.random.normal(k3, (8, 16, 65, 64), dtype=jnp.float32)
    out3 = scale_forward(x3, scale_param)
    jax.block_until_ready(out3)
    assert jnp.allclose(out3, x3 * scale_param[0], atol=1e-6), "mismatch vs reference (tiled shape)"

    print("KERNEL_OK")
</pallas_src>

<mosaic_0001>
module attributes {stable_mosaic.version = 11 : i64} {
  func.func @_scale_kernel(%arg0: i32, %arg1: memref<1x1xf32, #tpu.memory_space<smem>>, %arg2: memref<2x1024xf32, #tpu.memory_space<vmem>>, %arg3: memref<2x1024xf32, #tpu.memory_space<vmem>>) attributes {dimension_semantics = [#tpu.dimension_semantics<parallel>], iteration_bounds = array<i64: 1>, scalar_prefetch = 0 : i64, scratch_operands = 0 : i64, tpu.core_type = #tpu.core_type<tc>, window_params = [{transform_indices = @transform_0, window_bounds = array<i64: 1, 1>}, {transform_indices = @transform_1, window_bounds = array<i64: 2, 1024>}, {transform_indices = @transform_2, window_bounds = array<i64: 2, 1024>}]} {
    %c0 = arith.constant 0 : index
    %c0_0 = arith.constant 0 : index
    %0 = vector.load %arg2[%c0, %c0_0] : memref<2x1024xf32, #tpu.memory_space<vmem>>, vector<2x1024xf32>
    %c0_1 = arith.constant 0 : index
    %c0_2 = arith.constant 0 : index
    %1 = memref.load %arg1[%c0_1, %c0_2] : memref<1x1xf32, #tpu.memory_space<smem>>
    %2 = vector.broadcast %1 : f32 to vector<2x1024xf32>
    %3 = arith.mulf %0, %2 : vector<2x1024xf32>
    %c0_3 = arith.constant 0 : index
    %c0_4 = arith.constant 0 : index
    %4 = vector.load %arg3[%c0_3, %c0_4] : memref<2x1024xf32, #tpu.memory_space<vmem>>, vector<2x1024xf32>
    tpu.vector_store %arg3[%c0_3, %c0_4], %3 {strides = array<i32>} : memref<2x1024xf32, #tpu.memory_space<vmem>>, vector<2x1024xf32>,
    return
  }
  func.func @transform_0(%arg0: i32) -> (i32, i32) {
    %c0_i32 = arith.constant 0 : i32
    %c0_i32_0 = arith.constant 0 : i32
    %c0_i32_1 = arith.constant 0 : i32
    return %c0_i32, %c0_i32_0 : i32, i32
  }
  func.func @transform_1(%arg0: i32) -> (i32, i32) {
    %c0_i32 = arith.constant 0 : i32
    %c0_i32_0 = arith.constant 0 : i32
    return %arg0, %c0_i32 : i32, i32
  }
  func.func @transform_2(%arg0: i32) -> (i32, i32) {
    %c0_i32 = arith.constant 0 : i32
    %c0_i32_0 = arith.constant 0 : i32
    return %arg0, %c0_i32 : i32, i32
  }
}

</mosaic_0001>

<llo_original>
// kernel: tpu_custom_call.1
$region0: #{tpu_custom_call.1}
  #allocation0 [shape = 'u32[]', space=smem, size = 0x4, offset = 0x4, fixed_abs, tag = 'smem constant byte address 0x4 - core index']
  #allocation1 [shape = 'u32[144,128]{1,0:T(1,128)}', space=vmem, size = 0x12000, scoped, tag = 'internal scratch']
  #allocation2 [shape = 'f32[1,1]{1,0:T(1,128)S(6)}', space=smem, size = 0x200, scoped, tag = 'scoped memory for tpu_custom_call.1']
  %s0 = inlined_call_operand.<no memory space> [shape: f32[1,1], index: 0, kind: input, shape index: {}]
  %s1 = inlined_call_operand.hbm [shape: f32[2,1024], index: 1, kind: input, shape index: {}]
  %s2 = inlined_call_operand.hbm [shape: f32[2,1024], index: 2, kind: output, shape index: {}]
  %s3 = sld [smem:[#allocation0]]
  $region22: #{tpu_custom_call.1} parent=0
    _
  %s5 = ssub.s32 1, %s3
  %s6 = scalar_select 0, %s5, %s3
  %7 = sst [smem:[#allocation2]] %s0
  $region1: #{tpu_custom_call.1} parent=0
    #allocation3 [shape = 'u8[8192]{0}', space=vmem, size = 0x2000, scoped, tag = 'input window, operand 1, single buffered']
    #allocation4 [shape = 's32[1]{0}', space=sflag, size = 0x4, scoped, tag = 'scoped memory for tpu_custom_call.1']
    #allocation5 [shape = 's32[1]{0}', space=sflag, size = 0x4, scoped, tag = 'scoped memory for tpu_custom_call.1']
    #allocation6 [shape = 'u8[8192]{0}', space=vmem, size = 0x2000, scoped, tag = 'output window, operand 0, single buffered']
    %8 = vsyncpa [#allocation4], 0
    %9 = vsyncpa [#allocation5], 0
    // Predicated region
    $region2: #{tpu_custom_call.1} parent=1 // pred_check
      _
    $region3: #{tpu_custom_call.1} parent=1 // pred_check_branch
      %11 = sbr.rel (0) target = $region5
    $region4: #{tpu_custom_call.1} parent=1 // pred_region
      _
    $region5: #{tpu_custom_call.1} parent=1 // pred_fallthru
      _
    // Predicated region
    $region6: #{tpu_custom_call.1} parent=1 // pred_check
      _
    $region7: #{tpu_custom_call.1} parent=1 // pred_check_branch
      %13 = sbr.rel (0) target = $region9
    $region8: #{tpu_custom_call.1} parent=1 // pred_region
      %s15 = ssub.s32 256, 256
      %16 = vsyncadd [#allocation4], %s15
      %s18 = sshll.u32 [#allocation3], 4
      %s19 = int_to_ptr.vmem [resolvable:$true] %s18
      %21 = dma.hbm_to_vmem [thread:$0]  %s1, 256, %s19, [#allocation4]
    $region9: #{tpu_custom_call.1} parent=1 // pred_fallthru
      _
    // Predicated region
    $region10: #{tpu_custom_call.1} parent=1 // pred_check
      _
    $region11: #{tpu_custom_call.1} parent=1 // pred_check_branch
      %23 = sbr.rel (0) target = $region13
    $region12: #{tpu_custom_call.1} parent=1 // pred_region
      %24 = dma.done [#allocation4], 256
    $region13: #{tpu_custom_call.1} parent=1 // pred_fallthru
      _
    %v25 = vld [vmem:[#allocation3] sm:$0xff]
    %v26 = vld [vmem:[#allocation3 + $0x8] sm:$0xff]
    %s27 = sld [smem:[#allocation2]]
    %v28 = vstv %s27
    %v29 = vmul.f32 %v25, %v28
    %v30 = vmul.f32 %v26, %v28
    %31 = vst [vmem:[#allocation6] sm:$0xff] %v29
    %32 = vst [vmem:[#allocation6 + $0x8] sm:$0xff] %v30
    // Predicated region
    $region14: #{tpu_custom_call.1} parent=1 // pred_check
      _
    $region15: #{tpu_custom_call.1} parent=1 // pred_check_branch
      %34 = sbr.rel (0) target = $region17
    $region16: #{tpu_custom_call.1} parent=1 // pred_region
      %s36 = ssub.s32 256, 256
      %37 = vsyncadd [#allocation5], %s36
      %s39 = sshll.u32 [#allocation6], 4
      %s40 = int_to_ptr.vmem [resolvable:$true] %s39
      %42 = dma.vmem_to_hbm [thread:$0]  %s40, 256, %s2, [#allocation5]
    $region17: #{tpu_custom_call.1} parent=1 // pred_fallthru
      _
    // Predicated region
    $region18: #{tpu_custom_call.1} parent=1 // pred_check
      _
    $region19: #{tpu_custom_call.1} parent=1 // pred_check_branch
      %44 = sbr.rel (0) target = $region21
    $region20: #{tpu_custom_call.1} parent=1 // pred_region
      %45 = dma.done [#allocation5], 256
    $region21: #{tpu_custom_call.1} parent=1 // pred_fallthru
      _
    %46 = vsyncpa [#allocation4], 1
    %47 = vsyncpa [#allocation5], 1

</llo_original>
